<compile_context>
chip_gen: v7x
topology: tpu7x:2x2x1
jax: 0.10.0
libtpu: 0.0.40
codegen_flags: <defaults>
</compile_context>

<pallas_src>
import jax
import jax.numpy as jnp
from jax.experimental import pallas as pl
from jax.experimental.pallas import tpu as pltpu


def _ceil_to(x, m):
    return ((x + m - 1) // m) * m


def joint_project_kernel(z_ref, w2_ref, b2_ref, out_ref):
    """Fused tanh + project_layer on one (M_tile, V_tile) output tile.

    z_ref:   [M_tile, d_model]  pre-activation rows, (n, t, u)-ordered (bf16)
    w2_ref:  [d_model, V_tile]  project_layer weight tile (bf16)
    b2_ref:  [1, V_tile]        project_layer bias tile (f32)
    out_ref: [M_tile, V_tile]
    """
    h = jnp.tanh(z_ref[...].astype(jnp.float32))                 # EUP transcendental
    acc = jnp.dot(h.astype(w2_ref.dtype), w2_ref[...],
                  preferred_element_type=jnp.float32)            # MXU, f32 accumulate
    out_ref[...] = (acc + b2_ref[...]).astype(out_ref.dtype)


def jointnet_forward(enc_state, pred_state, params, *,
                     m_tile=256, v_tile=256,
                     compute_dtype=jnp.bfloat16, out_dtype=jnp.float32):
    """enc_state: [t, n, enc_dim], pred_state: [u, n, pred_dim] -> [n, t, u, vocab]."""
    w1, b1, w2, b2 = params["w1"], params["b1"], params["w2"], params["b2"]
    t, n, enc_dim = enc_state.shape
    u, n2, pred_dim = pred_state.shape
    assert n == n2
    d_model = w1.shape[1]
    vocab = w2.shape[1]

    w1e = w1[:enc_dim]          # [enc_dim, d_model]
    w1p = w1[enc_dim:]          # [pred_dim, d_model]

    # ---- layer 1: two big matmuls, done exactly once (hoisted out of the grid) ----
    enc_proj = jnp.einsum("tne,ek->ntk", enc_state, w1e)     # [n, t, d_model], f32
    pred_proj = jnp.einsum("unp,pk->nuk", pred_state, w1p)   # [n, u, d_model], f32

    # Broadcast pre-activation with b1 folded in.  Row order (n, t, u)-major means
    # the kernel's 2-D output is already in the module's final 'n t u d' layout.
    z = enc_proj[:, :, None, :] + pred_proj[:, None, :, :] + b1   # [n, t, u, d_model]
    M = n * t * u
    z2 = z.reshape(M, d_model).astype(compute_dtype)              # [M, d_model]

    # ---- tile / pad for the fused tanh + project kernel ----
    m_tile = min(m_tile, _ceil_to(M, 8))         # keep multiple of 8 sublanes
    v_tile = min(v_tile, _ceil_to(vocab, 128))   # keep multiple of 128 lanes
    Mp = _ceil_to(M, m_tile)
    Vp = _ceil_to(vocab, v_tile)

    if Mp != M:
        z2 = jnp.pad(z2, ((0, Mp - M), (0, 0)))
    w2c = w2.astype(compute_dtype)
    b2c = b2.astype(jnp.float32).reshape(1, vocab)
    if Vp != vocab:
        w2c = jnp.pad(w2c, ((0, 0), (0, Vp - vocab)))
        b2c = jnp.pad(b2c, ((0, 0), (0, Vp - vocab)))

    grid = (Mp // m_tile, Vp // v_tile)
    out2 = pl.pallas_call(
        joint_project_kernel,
        out_shape=jax.ShapeDtypeStruct((Mp, Vp), out_dtype),
        grid=grid,
        in_specs=[
            pl.BlockSpec((m_tile, d_model), lambda i, j: (i, 0)),
            pl.BlockSpec((d_model, v_tile), lambda i, j: (0, j)),
            pl.BlockSpec((1, v_tile), lambda i, j: (0, j)),
        ],
        out_specs=pl.BlockSpec((m_tile, v_tile), lambda i, j: (i, j)),
        compiler_params=pltpu.CompilerParams(
            dimension_semantics=("parallel", "parallel")),
    )(z2, w2c, b2c)

    out2 = out2[:M, :vocab]
    # Final 'n t u d' layout is a pure reshape (rows already (n, t, u)-ordered).
    return out2.reshape(n, t, u, vocab)


def init_params(key, enc_dim, pred_dim, d_model, vocab_size):
    k1, k2, k3, k4 = jax.random.split(key, 4)
    # Weights stored as [in, out] (equivalent to PyTorch's weight.T).
    return {
        "w1": jax.random.normal(k1, (enc_dim + pred_dim, d_model), jnp.float32) * 0.1,
        "b1": jax.random.normal(k2, (d_model,), jnp.float32) * 0.1,
        "w2": jax.random.normal(k3, (d_model, vocab_size), jnp.float32) * 0.1,
        "b2": jax.random.normal(k4, (vocab_size,), jnp.float32) * 0.1,
    }


def jointnet_reference(enc_state, pred_state, params):
    t = enc_state.shape[0]
    u = pred_state.shape[0]
    enc_b = jnp.broadcast_to(enc_state[:, None], (t, u) + enc_state.shape[1:])
    pred_b = jnp.broadcast_to(pred_state[None, :], (t, u) + pred_state.shape[1:])
    cat = jnp.concatenate([enc_b, pred_b], axis=-1)
    h = jnp.tanh(cat @ params["w1"] + params["b1"])
    out = h @ params["w2"] + params["b2"]
    return jnp.transpose(out, (2, 0, 1, 3))     # 't u n d -> n t u d'


if __name__ == "__main__":
    # Small shapes consistent with the module's [t, n, d] / [u, n, d] convention.
    t, u, n = 8, 6, 2
    enc_dim, pred_dim, d_model, vocab_size = 24, 16, 32, 48

    key = jax.random.PRNGKey(0)
    k_enc, k_pred, k_par = jax.random.split(key, 3)
    enc_state = jax.random.normal(k_enc, (t, n, enc_dim), jnp.float32)
    pred_state = jax.random.normal(k_pred, (u, n, pred_dim), jnp.float32)
    params = init_params(k_par, enc_dim, pred_dim, d_model, vocab_size)

    out = jointnet_forward(enc_state, pred_state, params)
    out = jax.block_until_ready(out)

    ref = jointnet_reference(enc_state, pred_state, params)
    assert out.shape == (n, t, u, vocab_size), out.shape
    # bf16 matmul operands (f32 accumulation) vs f32 reference -> relaxed tolerance.
    assert jnp.allclose(out, ref, atol=2e-2, rtol=2e-2), "mismatch vs reference"

    # TODO(synk): the 1-D inference path (enc/pred of rank 1) is a trivial two-GEMV
    # special case and is not given a dedicated kernel here.
    print("KERNEL_OK")
</pallas_src>

<mosaic_0001>
module attributes {stable_mosaic.version = 11 : i64} {
  func.func @joint_project_kernel(%arg0: i32, %arg1: i32, %arg2: memref<96x32xbf16, #tpu.memory_space<vmem>>, %arg3: memref<32x128xbf16, #tpu.memory_space<vmem>>, %arg4: memref<1x128xf32, #tpu.memory_space<vmem>>, %arg5: memref<96x128xf32, #tpu.memory_space<vmem>>) attributes {dimension_semantics = [#tpu.dimension_semantics<parallel>, #tpu.dimension_semantics<parallel>], iteration_bounds = array<i64: 1, 1>, scalar_prefetch = 0 : i64, scratch_operands = 0 : i64, tpu.core_type = #tpu.core_type<tc>, window_params = [{transform_indices = @transform_0, window_bounds = array<i64: 96, 32>}, {transform_indices = @transform_1, window_bounds = array<i64: 32, 128>}, {transform_indices = @transform_2, window_bounds = array<i64: 1, 128>}, {transform_indices = @transform_3, window_bounds = array<i64: 96, 128>}]} {
    %c0 = arith.constant 0 : index
    %c0_0 = arith.constant 0 : index
    %0 = vector.load %arg2[%c0, %c0_0] : memref<96x32xbf16, #tpu.memory_space<vmem>>, vector<96x32xbf16>
    %1 = arith.extf %0 : vector<96x32xbf16> to vector<96x32xf32>
    %2 = math.tanh %1 : vector<96x32xf32>
    %3 = arith.truncf %2 : vector<96x32xf32> to vector<96x32xbf16>
    %c0_1 = arith.constant 0 : index
    %c0_2 = arith.constant 0 : index
    %4 = vector.load %arg3[%c0_1, %c0_2] : memref<32x128xbf16, #tpu.memory_space<vmem>>, vector<32x128xbf16>
    %cst = arith.constant dense<0.000000e+00> : vector<96x128xf32>
    %5 = tpu.matmul %3, %4, %cst {dimension_numbers = #tpu.dot_dimension_numbers<[1], [0], [0], [1], [0, 0, 1, 1], [], []>} : vector<96x32xbf16>, vector<32x128xbf16>, vector<96x128xf32> -> vector<96x128xf32>
    %c0_3 = arith.constant 0 : index
    %c0_4 = arith.constant 0 : index
    %6 = vector.load %arg4[%c0_3, %c0_4] : memref<1x128xf32, #tpu.memory_space<vmem>>, vector<1x128xf32>
    %7 = vector.broadcast %6 : vector<1x128xf32> to vector<96x128xf32>
    %8 = arith.addf %5, %7 : vector<96x128xf32>
    %c0_5 = arith.constant 0 : index
    %c0_6 = arith.constant 0 : index
    %9 = vector.load %arg5[%c0_5, %c0_6] : memref<96x128xf32, #tpu.memory_space<vmem>>, vector<96x128xf32>
    tpu.vector_store %arg5[%c0_5, %c0_6], %8 {strides = array<i32>} : memref<96x128xf32, #tpu.memory_space<vmem>>, vector<96x128xf32>,
    return
  }
  func.func @transform_0(%arg0: i32, %arg1: i32) -> (i32, i32) {
    %c0_i32 = arith.constant 0 : i32
    %c0_i32_0 = arith.constant 0 : i32
    return %arg0, %c0_i32 : i32, i32
  }
  func.func @transform_1(%arg0: i32, %arg1: i32) -> (i32, i32) {
    %c0_i32 = arith.constant 0 : i32
    %c0_i32_0 = arith.constant 0 : i32
    return %c0_i32, %arg1 : i32, i32
  }
  func.func @transform_2(%arg0: i32, %arg1: i32) -> (i32, i32) {
    %c0_i32 = arith.constant 0 : i32
    %c0_i32_0 = arith.constant 0 : i32
    return %c0_i32, %arg1 : i32, i32
  }
  func.func @transform_3(%arg0: i32, %arg1: i32) -> (i32, i32) {
    %c0_i32 = arith.constant 0 : i32
    return %arg0, %arg1 : i32, i32
  }
}

</mosaic_0001>

<llo_original>
// kernel: tpu_custom_call.1
$region0: #{tpu_custom_call.1}
  #allocation0 [shape = 'u32[]', space=smem, size = 0x4, offset = 0x4, fixed_abs, tag = 'smem constant byte address 0x4 - core index']
  #allocation1 [shape = 'u32[144,128]{1,0:T(1,128)}', space=vmem, size = 0x12000, scoped, tag = 'internal scratch']
  %s0 = inlined_call_operand.vmem [shape: bf16[96,32], index: 0, kind: input, shape index: {}]
  %s1 = inlined_call_operand.vmem [shape: bf16[32,128], index: 1, kind: input, shape index: {}]
  %s2 = inlined_call_operand.vmem [shape: f32[1,128], index: 2, kind: input, shape index: {}]
  %s3 = inlined_call_operand.hbm [shape: f32[96,128], index: 3, kind: output, shape index: {}]
  %s4 = sld [smem:[#allocation0]]
  $region22: #{tpu_custom_call.1} parent=0
    _
  %s6 = ssub.s32 1, %s4
  %s7 = scalar_select 0, %s6, %s4
  $region1: #{tpu_custom_call.1} parent=0
    #allocation2 [shape = 'u8[49152]{0}', space=vmem, size = 0xc000, scoped, tag = 'output window, operand 0, single buffered']
    #allocation3 [shape = 's32[1]{0}', space=sflag, size = 0x4, scoped, tag = 'scoped memory for tpu_custom_call.1']
    %8 = vsyncpa [#allocation3], 0
    // Predicated region
    $region2: #{tpu_custom_call.1} parent=1 // pred_check
      _
    $region3: #{tpu_custom_call.1} parent=1 // pred_check_branch
      %10 = sbr.rel (0) target = $region5
    $region4: #{tpu_custom_call.1} parent=1 // pred_region
      _
    $region5: #{tpu_custom_call.1} parent=1 // pred_fallthru
      _
    // Predicated region
    $region6: #{tpu_custom_call.1} parent=1 // pred_check
      _
    $region7: #{tpu_custom_call.1} parent=1 // pred_check_branch
      %12 = sbr.rel (0) target = $region9
    $region8: #{tpu_custom_call.1} parent=1 // pred_region
      _
    $region9: #{tpu_custom_call.1} parent=1 // pred_fallthru
      _
    // Predicated region
    $region10: #{tpu_custom_call.1} parent=1 // pred_check
      _
    $region11: #{tpu_custom_call.1} parent=1 // pred_check_branch
      %14 = sbr.rel (0) target = $region13
    $region12: #{tpu_custom_call.1} parent=1 // pred_region
      _
    $region13: #{tpu_custom_call.1} parent=1 // pred_fallthru
      _
    %v16 = vld [vmem:[%s0] sm:$0xf]
    %v17 = vld [vmem:[%s0 + $0x4] sm:$0xf]
    %v18 = vld [vmem:[%s0 + $0x8] sm:$0xf]
    %v19 = vld [vmem:[%s0 + $0xc] sm:$0xf]
    %v20 = vld [vmem:[%s0 + $0x10] sm:$0xf]
    %v21 = vld [vmem:[%s0 + $0x14] sm:$0xf]
    %v22 = vld [vmem:[%s0 + $0x18] sm:$0xf]
    %v23 = vld [vmem:[%s0 + $0x1c] sm:$0xf]
    %v24 = vld [vmem:[%s0 + $0x20] sm:$0xf]
    %v25 = vld [vmem:[%s0 + $0x24] sm:$0xf]
    %v26 = vld [vmem:[%s0 + $0x28] sm:$0xf]
    %v27 = vld [vmem:[%s0 + $0x2c] sm:$0xf]
    %v28 = vunpack.c.l.bf16 %v16
    %v29 = vunpack.c.l.bf16 %v17
    %v30 = vunpack.c.l.bf16 %v18
    %v31 = vunpack.c.l.bf16 %v19
    %v32 = vunpack.c.l.bf16 %v20
    %v33 = vunpack.c.l.bf16 %v21
    %v34 = vunpack.c.l.bf16 %v22
    %v35 = vunpack.c.l.bf16 %v23
    %v36 = vunpack.c.l.bf16 %v24
    %v37 = vunpack.c.l.bf16 %v25
    %v38 = vunpack.c.l.bf16 %v26
    %v39 = vunpack.c.l.bf16 %v27
    %v40 = vtanh.pop %v28
    %v41 = vtanh.pop %v29
    %v42 = vtanh.pop %v30
    %v43 = vtanh.pop %v31
    %v44 = vtanh.pop %v32
    %v45 = vtanh.pop %v33
    %v46 = vtanh.pop %v34
    %v47 = vtanh.pop %v35
    %v48 = vtanh.pop %v36
    %v49 = vtanh.pop %v37
    %v50 = vtanh.pop %v38
    %v51 = vtanh.pop %v39
    %v52 = vpack.c.bf16 %v41, %v40
    %v53 = vpack.c.bf16 %v43, %v42
    %v54 = vpack.c.bf16 %v45, %v44
    %v55 = vpack.c.bf16 %v47, %v46
    %v56 = vpack.c.bf16 %v49, %v48
    %v57 = vpack.c.bf16 %v51, %v50
    %v58 = vld [vmem:[%s1] sm:$0xf]
    %v59 = vld [vmem:[%s1 + $0x4] sm:$0xf]
    %v60 = vld [vmem:[%s1 + $0x8] sm:$0xf]
    %v61 = vld [vmem:[%s1 + $0xc] sm:$0xf]
    %v62 = vld [vmem:[%s2] sm:$0x1]
    %v64 = vlaneseq
    %v65 = vshrl.u32 %v64, 7
    %v66 = vsub.s32 0, %v65
    %v67 = vrot.slane %v62, %v66
    %v73 = vunpack.c.l.b16 %v58
    %v74 = vunpack.c.l.b16 %v59
    %v75 = vunpack.c.l.b16 %v60
    %v76 = vunpack.c.l.b16 %v61
    %v77 = vpack.c.b16 %v74, %v73
    %v78 = vpack.c.b16 %v76, %v75
    %vm81 = vcmask 261120
    %v83 = vsel %vm81, %v52, 0
    %v86 = vsel %vm81, %v53, 0
    %v89 = vsel %vm81, %v54, 0
    %v92 = vsel %vm81, %v55, 0
    %v95 = vsel %vm81, %v56, 0
    %v98 = vsel %vm81, %v57, 0
    %100 = vmatprep.subr.bf16.mxu0 0
    %101 = vmatpush1.bf16.msra.mxu0 %v77
    %102 = vmatprep.subr.bf16.mxu0 0
    %103 = vmatpush1.bf16.msra.mxu0 %v78
    %104 = vmatprep.subr.bf16.mxu0 0
    %105 = vmatpush1.bf16.msra.mxu0 0
    %106 = vmatprep.subr.bf16.mxu0 0
    %107 = vmatpush1.bf16.msra.mxu0 0
    %108 = vmatprep.subr.bf16.mxu0 0
    %109 = vmatpush1.bf16.msra.mxu0 0
    %110 = vmatprep.subr.bf16.mxu0 0
    %111 = vmatpush1.bf16.msra.mxu0 0
    %112 = vmatprep.subr.bf16.mxu0 0
    %113 = vmatpush1.bf16.msra.mxu0 0
    %114 = vmatprep.subr.bf16.mxu0 0
    %115 = vmatpush1.bf16.msra.mxu0 0
    %116 = vmatprep.subr.bf16.mxu0 0
    %117 = vmatpush1.bf16.msra.mxu0 0
    %118 = vmatprep.subr.bf16.mxu0 0
    %119 = vmatpush1.bf16.msra.mxu0 0
    %120 = vmatprep.subr.bf16.mxu0 0
    %121 = vmatpush1.bf16.msra.mxu0 0
    %122 = vmatprep.subr.bf16.mxu0 0
    %123 = vmatpush1.bf16.msra.mxu0 0
    %124 = vmatprep.subr.bf16.mxu0 0
    %125 = vmatpush1.bf16.msra.mxu0 0
    %126 = vmatprep.subr.bf16.mxu0 0
    %127 = vmatpush1.bf16.msra.mxu0 0
    %128 = vmatprep.subr.bf16.mxu0 0
    %129 = vmatpush1.bf16.msra.mxu0 0
    %130 = vmatprep.subr.bf16.mxu0 0
    %131 = vmatpush1.bf16.msra.mxu0 0
    %132 = vmatprep.mubr.bf16.mxu0 0
    %133 = vmatmul.mubr.bf16.gmra.mrb[0].mxu0 %v83
    %v134 = vpop.f32.mrb[0].mxu0
    %v135 = vadd.f32 %v67, %v134
    %v136 = vpop.f32.mrb[0].mxu0
    %v137 = vpop.f32.mrb[0].mxu0
    %v138 = vadd.f32 %v67, %v137
    %v139 = vpop.f32.mrb[0].mxu0
    %140 = vmatprep.mubr.bf16.mxu0 0
    %141 = vmatmul.mubr.bf16.gmra.mrb[0].mxu0 %v86
    %v142 = vpop.f32.mrb[0].mxu0
    %v143 = vadd.f32 %v67, %v142
    %v144 = vpop.f32.mrb[0].mxu0
    %v145 = vpop.f32.mrb[0].mxu0
    %v146 = vadd.f32 %v67, %v145
    %v147 = vpop.f32.mrb[0].mxu0
    %148 = vmatprep.mubr.bf16.mxu0 0
    %149 = vmatmul.mubr.bf16.gmra.mrb[0].mxu0 %v89
    %v150 = vpop.f32.mrb[0].mxu0
    %v151 = vadd.f32 %v67, %v150
    %v152 = vpop.f32.mrb[0].mxu0
    %v153 = vpop.f32.mrb[0].mxu0
    %v154 = vadd.f32 %v67, %v153
    %v155 = vpop.f32.mrb[0].mxu0
    %156 = vmatprep.mubr.bf16.mxu0 0
    %157 = vmatmul.mubr.bf16.gmra.mrb[0].mxu0 %v92
    %v158 = vpop.f32.mrb[0].mxu0
    %v159 = vadd.f32 %v67, %v158
    %v160 = vpop.f32.mrb[0].mxu0
    %v161 = vpop.f32.mrb[0].mxu0
    %v162 = vadd.f32 %v67, %v161
    %v163 = vpop.f32.mrb[0].mxu0
    %164 = vmatprep.mubr.bf16.mxu0 0
    %165 = vmatmul.mubr.bf16.gmra.mrb[0].mxu0 %v95
    %v166 = vpop.f32.mrb[0].mxu0
    %v167 = vadd.f32 %v67, %v166
    %v168 = vpop.f32.mrb[0].mxu0
    %v169 = vpop.f32.mrb[0].mxu0
    %v170 = vadd.f32 %v67, %v169
    %v171 = vpop.f32.mrb[0].mxu0
    %172 = vmatprep.mubr.bf16.mxu0 0
    %173 = vmatmul.mubr.bf16.gmra.mrb[0].mxu0 %v98
    %v174 = vpop.f32.mrb[0].mxu0
    %v175 = vadd.f32 %v67, %v174
    %v176 = vpop.f32.mrb[0].mxu0
    %v177 = vpop.f32.mrb[0].mxu0
    %v178 = vadd.f32 %v67, %v177
    %v179 = vpop.f32.mrb[0].mxu0
    %180 = vdwg.mxu0
    %181 = vst [vmem:[#allocation2] sm:$0xff] %v135
    %182 = vst [vmem:[#allocation2 + $0x8] sm:$0xff] %v138
    %183 = vst [vmem:[#allocation2 + $0x10] sm:$0xff] %v143
    %184 = vst [vmem:[#allocation2 + $0x18] sm:$0xff] %v146
    %185 = vst [vmem:[#allocation2 + $0x20] sm:$0xff] %v151
    %186 = vst [vmem:[#allocation2 + $0x28] sm:$0xff] %v154
    %187 = vst [vmem:[#allocation2 + $0x30] sm:$0xff] %v159
    %188 = vst [vmem:[#allocation2 + $0x38] sm:$0xff] %v162
    %189 = vst [vmem:[#allocation2 + $0x40] sm:$0xff] %v167
    %190 = vst [vmem:[#allocation2 + $0x48] sm:$0xff] %v170
    %191 = vst [vmem:[#allocation2 + $0x50] sm:$0xff] %v175
    %192 = vst [vmem:[#allocation2 + $0x58] sm:$0xff] %v178
    // Predicated region
    $region14: #{tpu_custom_call.1} parent=1 // pred_check
      _
    $region15: #{tpu_custom_call.1} parent=1 // pred_check_branch
      %194 = sbr.rel (0) target = $region17
    $region16: #{tpu_custom_call.1} parent=1 // pred_region
      %s196 = ssub.s32 1536, 1536
      %197 = vsyncadd [#allocation3], %s196
      %s198 = sshll.u32 [#allocation2], 4
      %s199 = int_to_ptr.vmem [resolvable:$true] %s198
      %204 = dma.vmem_to_hbm [thread:$0]  %s199, 1536, %s3, [#allocation3], 128, 128, 8
    $region17: #{tpu_custom_call.1} parent=1 // pred_fallthru
      _
    // Predicated region
    $region18: #{tpu_custom_call.1} parent=1 // pred_check
      _
    $region19: #{tpu_custom_call.1} parent=1 // pred_check_branch
      %206 = sbr.rel (0) target = $region21
    $region20: #{tpu_custom_call.1} parent=1 // pred_region
      %207 = dma.done [#allocation3], 1536
    $region21: #{tpu_custom_call.1} parent=1 // pred_fallthru
      _
    %208 = vsyncpa [#allocation3], 1

</llo_original>
